<compile_context>
chip_gen: v7x
topology: tpu7x:2x2x1
jax: 0.10.0
libtpu: 0.0.40
codegen_flags: <defaults>
</compile_context>

<pallas_src>
import jax
import jax.numpy as jnp
import numpy as np
from jax import lax
from jax.experimental import pallas as pl
from jax.experimental.pallas import tpu as pltpu

# Batches per grid step.  Static Python unroll of the per-batch loops is used, so keep
# this modest (each phase-1 iteration's big live values are stored to scratch right away,
# so vreg pressure stays low up to 16).
_MAX_BT = 16


def attention_kernel(v_ref, q_ref, w1_ref, b1_ref, wl_ref, bl_ref, w2_ref, b2_ref,
                     out_ref, ql_scr, v1_scr, fuse_scr):
    # v_ref  : (bt, Cv, HW)   q_ref  : (bt, Cq)
    # w1_ref : (mid, Cv)      b1_ref : (mid, 1)
    # wl_ref : (mid, Cq)      bl_ref : (mid, 1)
    # w2_ref : (G, mid)       b2_ref : (G, 1)
    # out_ref: (bt, G, mid)
    # ql_scr : (mid, bt)      v1_scr : (bt, mid, HW)     fuse_scr : (mid, bt*HW)
    bt, cv, hw = v_ref.shape
    w1 = w1_ref[...]
    b1 = b1_ref[...]
    w2 = w2_ref[...]
    b2 = b2_ref[...]

    # lin1 folded in-kernel: one (mid,Cq)@(Cq,bt) matmul for all bt batches, stored
    # transposed so each batch's (mid,1) column broadcasts over the HW lane axis.
    ql_scr[...] = lax.dot_general(
        wl_ref[...], q_ref[...], (((1,), (1,)), ((), ())),
        preferred_element_type=jnp.float32) + bl_ref[...]                 # (mid, bt)

    # ---- Phase 1: conv1 (VPU, Cv unrolled) + fuse, lane-concatenated into scratch ----
    for b in range(bt):                                                   # static unroll
        vb = v_ref[b]                                                     # (Cv, HW)
        v1 = b1 + w1[:, 0:1] * vb[0:1, :]                                 # (mid, HW)
        for c in range(1, cv):
            v1 = v1 + w1[:, c:c + 1] * vb[c:c + 1, :]
        v1_scr[b] = v1
        qlb = ql_scr[:, b:b + 1]                                          # (mid, 1)
        fuse_scr[:, b * hw:(b + 1) * hw] = jnp.maximum(v1 * qlb, 0.0)

    # ---- Phase 2: conv2 as ONE lane-dense MXU pass over all bt batches ----
    x = jnp.dot(w2, fuse_scr[...],
                preferred_element_type=jnp.float32) + b2                  # (G, bt*HW)

    # ---- Phase 3: per-batch softmax (lane reduce over its HW chunk) + weighted sum ----
    for b in range(bt):                                                   # static unroll
        xb = x[:, b * hw:(b + 1) * hw]                                    # (G, HW)
        mb = jnp.max(xb, axis=-1, keepdims=True)                          # (G, 1)
        eb = jnp.exp(xb - mb)                                             # (G, HW)
        sb = jnp.sum(eb, axis=-1, keepdims=True)                          # (G, 1), >= 1
        # Weighted average of conv1 features: contract over HW (K=256, MXU-friendly).
        wa = lax.dot_general(eb, v1_scr[b], (((1,), (1,)), ((), ())),
                             preferred_element_type=jnp.float32)          # (G, mid)
        # Deferred softmax normalisation: approx reciprocal (EUP) + one Newton step.
        r = pl.reciprocal(sb, approx=True)
        r = r * (2.0 - sb * r)
        out_ref[b] = wa * r


def attention_forward(v_nchw, q, params, *, max_bt=_MAX_BT):
    """v_nchw: (B, Cv, H, W), q: (B, Cq).  Params in native PyTorch layouts:
       w1 (mid, Cv), b1 (mid,), wl (mid, Cq), bl (mid,), w2 (G, mid), b2 (G,).
       Returns (B, G*mid)."""
    w1, b1, wl, bl, w2, b2 = params
    B, Cv, H, W = v_nchw.shape
    HW = H * W
    mid = w1.shape[0]
    G = w2.shape[0]
    Cq = wl.shape[1]

    # Channels-first, spatially flattened view -- a free reshape of NCHW (no transpose);
    # spatial index k = h*W + w matches PyTorch's .view().
    v_flat = v_nchw.reshape(B, Cv, HW).astype(jnp.float32)
    q_in = q.astype(jnp.float32)

    # Batch tiling: single grid step for small B; otherwise cap at max_bt (multiple of 8)
    # and zero-pad B instead of degrading to tiny steps for awkward batch sizes.
    bt = B if B <= max_bt else max_bt
    n_steps = -(-B // bt)
    B_pad = n_steps * bt
    if B_pad != B:
        v_flat = jnp.pad(v_flat, ((0, B_pad - B), (0, 0), (0, 0)))
        q_in = jnp.pad(q_in, ((0, B_pad - B), (0, 0)))

    w1k = w1.astype(jnp.float32)
    b1k = b1.reshape(mid, 1).astype(jnp.float32)
    wlk = wl.astype(jnp.float32)
    blk = bl.reshape(mid, 1).astype(jnp.float32)
    w2k = w2.astype(jnp.float32)
    b2k = b2.reshape(G, 1).astype(jnp.float32)

    out = pl.pallas_call(
        attention_kernel,
        out_shape=jax.ShapeDtypeStruct((B_pad, G, mid), jnp.float32),
        grid_spec=pltpu.PrefetchScalarGridSpec(
            num_scalar_prefetch=0,
            grid=(n_steps,),
            in_specs=[
                pl.BlockSpec((bt, Cv, HW), lambda i: (i, 0, 0)),   # v
                pl.BlockSpec((bt, Cq), lambda i: (i, 0)),          # q (lin1 in-kernel)
                pl.BlockSpec((mid, Cv), lambda i: (0, 0)),         # w1
                pl.BlockSpec((mid, 1), lambda i: (0, 0)),          # b1
                pl.BlockSpec((mid, Cq), lambda i: (0, 0)),         # wl
                pl.BlockSpec((mid, 1), lambda i: (0, 0)),          # bl
                pl.BlockSpec((G, mid), lambda i: (0, 0)),          # w2
                pl.BlockSpec((G, 1), lambda i: (0, 0)),            # b2
            ],
            out_specs=pl.BlockSpec((bt, G, mid), lambda i: (i, 0, 0)),
            scratch_shapes=[
                pltpu.VMEM((mid, bt), jnp.float32),        # ql (transposed lin1 output)
                pltpu.VMEM((bt, mid, HW), jnp.float32),    # conv1 features
                pltpu.VMEM((mid, bt * HW), jnp.float32),   # lane-concatenated fuse
            ],
        ),
        # Splitting us-scale work across TensorCores just doubles fixed overhead; grid
        # steps (when B is large) are simply iterated.
        compiler_params=pltpu.CompilerParams(dimension_semantics=("arbitrary",)),
    )(v_flat, q_in, w1k, b1k, wlk, blk, w2k, b2k)

    if B_pad != B:
        out = out[:B]
    # (B, G, mid) -> (B, G*mid) is a free, contiguous reshape (PyTorch `view(b, -1)`).
    return out.reshape(B, G * mid)


def attention_reference(v_nchw, q, params):
    """Pure-JAX reference mirroring the PyTorch forward (dropout p=0)."""
    w1, b1, wl, bl, w2, b2 = params
    B = v_nchw.shape[0]
    mid = w1.shape[0]
    G = w2.shape[0]
    v1 = jnp.einsum('mc,bchw->bmhw', w1, v_nchw) + b1.reshape(1, mid, 1, 1)
    ql = q @ wl.T + bl                                               # (B, mid)
    fuse = jnp.maximum(v1 * ql[:, :, None, None], 0.0)
    x = jnp.einsum('gm,bmhw->bghw', w2, fuse) + b2.reshape(1, G, 1, 1)
    xf = x.reshape(B, G, -1)                                         # (B, G, HW)
    attn = jax.nn.softmax(xf, axis=-1)
    v1f = v1.reshape(B, 1, mid, -1)                                  # (B, 1, mid, HW)
    wa = (attn[:, :, None, :] * v1f).sum(-1)                         # (B, G, mid)
    return wa.reshape(B, -1)


if __name__ == "__main__":
    # Small shapes consistent with the module's forward.
    B = 2
    v_features = 4       # input image-feature channels
    q_features = 32      # question feature size
    mid_features = 32
    num_attn_maps = 2    # glimpses (G)
    H = W = 16           # HW = 256 spatial positions

    key = jax.random.PRNGKey(0)
    k = jax.random.split(key, 8)

    v = jax.random.normal(k[0], (B, v_features, H, W), dtype=jnp.float32)
    q = jax.random.normal(k[1], (B, q_features), dtype=jnp.float32)

    # Parameters in native PyTorch layouts (conv weights squeezed to 2-D).
    w1 = 0.1 * jax.random.normal(k[2], (mid_features, v_features), dtype=jnp.float32)
    b1 = 0.1 * jax.random.normal(k[3], (mid_features,), dtype=jnp.float32)
    wl = 0.1 * jax.random.normal(k[4], (mid_features, q_features), dtype=jnp.float32)
    bl = 0.1 * jax.random.normal(k[5], (mid_features,), dtype=jnp.float32)
    w2 = 0.1 * jax.random.normal(k[6], (num_attn_maps, mid_features), dtype=jnp.float32)
    b2 = 0.1 * jax.random.normal(k[7], (num_attn_maps,), dtype=jnp.float32)

    params = (w1, b1, wl, bl, w2, b2)

    out = jax.jit(attention_forward)(v, q, params)
    jax.block_until_ready(out)

    ref = attention_reference(v, q, params)
    assert out.shape == (B, num_attn_maps * mid_features), out.shape
    # Tolerance leaves headroom for the approx-reciprocal (+ Newton) softmax denominator.
    np.testing.assert_allclose(np.asarray(out), np.asarray(ref), rtol=2e-5, atol=2e-5)

    print("KERNEL_OK")
</pallas_src>

<mosaic_0001>
module attributes {stable_mosaic.version = 11 : i64} {
  func.func @attention_kernel(%arg0: i32, %arg1: memref<2x4x256xf32, #tpu.memory_space<vmem>>, %arg2: memref<2x32xf32, #tpu.memory_space<vmem>>, %arg3: memref<32x4xf32, #tpu.memory_space<vmem>>, %arg4: memref<32x1xf32, #tpu.memory_space<vmem>>, %arg5: memref<32x32xf32, #tpu.memory_space<vmem>>, %arg6: memref<32x1xf32, #tpu.memory_space<vmem>>, %arg7: memref<2x32xf32, #tpu.memory_space<vmem>>, %arg8: memref<2x1xf32, #tpu.memory_space<vmem>>, %arg9: memref<2x2x32xf32, #tpu.memory_space<vmem>>, %arg10: memref<32x2xf32, #tpu.memory_space<vmem>>, %arg11: memref<2x32x256xf32, #tpu.memory_space<vmem>>, %arg12: memref<32x512xf32, #tpu.memory_space<vmem>>) attributes {dimension_semantics = [#tpu.dimension_semantics<arbitrary>], iteration_bounds = array<i64: 1>, scalar_prefetch = 0 : i64, scratch_operands = 3 : i64, tpu.core_type = #tpu.core_type<tc>, window_params = [{transform_indices = @transform_0, window_bounds = array<i64: 2, 4, 256>}, {transform_indices = @transform_1, window_bounds = array<i64: 2, 32>}, {pipeline_mode = #tpu.pipeline_mode<synchronous>, transform_indices = @transform_2, window_bounds = array<i64: 32, 4>}, {pipeline_mode = #tpu.pipeline_mode<synchronous>, transform_indices = @transform_3, window_bounds = array<i64: 32, 1>}, {pipeline_mode = #tpu.pipeline_mode<synchronous>, transform_indices = @transform_4, window_bounds = array<i64: 32, 32>}, {pipeline_mode = #tpu.pipeline_mode<synchronous>, transform_indices = @transform_5, window_bounds = array<i64: 32, 1>}, {pipeline_mode = #tpu.pipeline_mode<synchronous>, transform_indices = @transform_6, window_bounds = array<i64: 2, 32>}, {pipeline_mode = #tpu.pipeline_mode<synchronous>, transform_indices = @transform_7, window_bounds = array<i64: 2, 1>}, {transform_indices = @transform_8, window_bounds = array<i64: 2, 2, 32>}]} {
    %c0 = arith.constant 0 : index
    %c0_0 = arith.constant 0 : index
    %0 = vector.load %arg3[%c0, %c0_0] : memref<32x4xf32, #tpu.memory_space<vmem>>, vector<32x4xf32>
    %c0_1 = arith.constant 0 : index
    %c0_2 = arith.constant 0 : index
    %1 = vector.load %arg4[%c0_1, %c0_2] : memref<32x1xf32, #tpu.memory_space<vmem>>, vector<32x1xf32>
    %c0_3 = arith.constant 0 : index
    %c0_4 = arith.constant 0 : index
    %2 = vector.load %arg7[%c0_3, %c0_4] : memref<2x32xf32, #tpu.memory_space<vmem>>, vector<2x32xf32>
    %c0_5 = arith.constant 0 : index
    %c0_6 = arith.constant 0 : index
    %3 = vector.load %arg8[%c0_5, %c0_6] : memref<2x1xf32, #tpu.memory_space<vmem>>, vector<2x1xf32>
    %c0_7 = arith.constant 0 : index
    %c0_8 = arith.constant 0 : index
    %4 = vector.load %arg5[%c0_7, %c0_8] : memref<32x32xf32, #tpu.memory_space<vmem>>, vector<32x32xf32>
    %c0_9 = arith.constant 0 : index
    %c0_10 = arith.constant 0 : index
    %5 = vector.load %arg2[%c0_9, %c0_10] : memref<2x32xf32, #tpu.memory_space<vmem>>, vector<2x32xf32>
    %cst = arith.constant dense<0.000000e+00> : vector<32x2xf32>
    %6 = tpu.matmul %4, %5, %cst {dimension_numbers = #tpu.dot_dimension_numbers<[1], [1], [0], [0], [0, 0, 1, 0], [], []>} : vector<32x32xf32>, vector<2x32xf32>, vector<32x2xf32> -> vector<32x2xf32>
    %c0_11 = arith.constant 0 : index
    %c0_12 = arith.constant 0 : index
    %7 = vector.load %arg6[%c0_11, %c0_12] : memref<32x1xf32, #tpu.memory_space<vmem>>, vector<32x1xf32>
    %8 = vector.broadcast %7 : vector<32x1xf32> to vector<32x2xf32>
    %9 = arith.addf %6, %8 : vector<32x2xf32>
    %c0_13 = arith.constant 0 : index
    %c0_14 = arith.constant 0 : index
    %10 = vector.load %arg10[%c0_13, %c0_14] : memref<32x2xf32, #tpu.memory_space<vmem>>, vector<32x2xf32>
    tpu.vector_store %arg10[%c0_13, %c0_14], %9 {strides = array<i32>} : memref<32x2xf32, #tpu.memory_space<vmem>>, vector<32x2xf32>,
    %c0_15 = arith.constant 0 : index
    %c0_16 = arith.constant 0 : index
    %c0_17 = arith.constant 0 : index
    %11 = vector.load %arg1[%c0_15, %c0_16, %c0_17] : memref<2x4x256xf32, #tpu.memory_space<vmem>>, vector<1x4x256xf32>
    %12 = vector.shape_cast %11 : vector<1x4x256xf32> to vector<4x256xf32>
    %13 = vector.extract_strided_slice %0 {offsets = [0, 0], sizes = [32, 1], strides = [1, 1]} : vector<32x4xf32> to vector<32x1xf32>
    %14 = vector.extract_strided_slice %12 {offsets = [0, 0], sizes = [1, 256], strides = [1, 1]} : vector<4x256xf32> to vector<1x256xf32>
    %15 = vector.broadcast %13 : vector<32x1xf32> to vector<32x256xf32>
    %16 = vector.broadcast %14 : vector<1x256xf32> to vector<32x256xf32>
    %17 = arith.mulf %15, %16 : vector<32x256xf32>
    %18 = vector.broadcast %1 : vector<32x1xf32> to vector<32x256xf32>
    %19 = arith.addf %18, %17 : vector<32x256xf32>
    %20 = vector.extract_strided_slice %0 {offsets = [0, 1], sizes = [32, 1], strides = [1, 1]} : vector<32x4xf32> to vector<32x1xf32>
    %21 = vector.extract_strided_slice %12 {offsets = [1, 0], sizes = [1, 256], strides = [1, 1]} : vector<4x256xf32> to vector<1x256xf32>
    %22 = vector.broadcast %20 : vector<32x1xf32> to vector<32x256xf32>
    %23 = vector.broadcast %21 : vector<1x256xf32> to vector<32x256xf32>
    %24 = arith.mulf %22, %23 : vector<32x256xf32>
    %25 = arith.addf %19, %24 : vector<32x256xf32>
    %26 = vector.extract_strided_slice %0 {offsets = [0, 2], sizes = [32, 1], strides = [1, 1]} : vector<32x4xf32> to vector<32x1xf32>
    %27 = vector.extract_strided_slice %12 {offsets = [2, 0], sizes = [1, 256], strides = [1, 1]} : vector<4x256xf32> to vector<1x256xf32>
    %28 = vector.broadcast %26 : vector<32x1xf32> to vector<32x256xf32>
    %29 = vector.broadcast %27 : vector<1x256xf32> to vector<32x256xf32>
    %30 = arith.mulf %28, %29 : vector<32x256xf32>
    %31 = arith.addf %25, %30 : vector<32x256xf32>
    %32 = vector.extract_strided_slice %0 {offsets = [0, 3], sizes = [32, 1], strides = [1, 1]} : vector<32x4xf32> to vector<32x1xf32>
    %33 = vector.extract_strided_slice %12 {offsets = [3, 0], sizes = [1, 256], strides = [1, 1]} : vector<4x256xf32> to vector<1x256xf32>
    %34 = vector.broadcast %32 : vector<32x1xf32> to vector<32x256xf32>
    %35 = vector.broadcast %33 : vector<1x256xf32> to vector<32x256xf32>
    %36 = arith.mulf %34, %35 : vector<32x256xf32>
    %37 = arith.addf %31, %36 : vector<32x256xf32>
    %c0_18 = arith.constant 0 : index
    %c0_19 = arith.constant 0 : index
    %c0_20 = arith.constant 0 : index
    %38 = vector.load %arg11[%c0_18, %c0_19, %c0_20] : memref<2x32x256xf32, #tpu.memory_space<vmem>>, vector<1x32x256xf32>
    %39 = vector.shape_cast %38 : vector<1x32x256xf32> to vector<32x256xf32>
    %40 = vector.shape_cast %37 : vector<32x256xf32> to vector<1x32x256xf32>
    tpu.vector_store %arg11[%c0_18, %c0_19, %c0_20], %40 {strides = array<i32>} : memref<2x32x256xf32, #tpu.memory_space<vmem>>, vector<1x32x256xf32>,
    %c0_21 = arith.constant 0 : index
    %c0_22 = arith.constant 0 : index
    %41 = vector.load %arg10[%c0_21, %c0_22] : memref<32x2xf32, #tpu.memory_space<vmem>>, vector<32x1xf32>
    %42 = vector.broadcast %41 : vector<32x1xf32> to vector<32x256xf32>
    %43 = arith.mulf %37, %42 : vector<32x256xf32>
    %cst_23 = arith.constant 0.000000e+00 : f32
    %44 = vector.broadcast %cst_23 : f32 to vector<32x256xf32>
    %45 = arith.maximumf %43, %44 : vector<32x256xf32>
    %c0_24 = arith.constant 0 : index
    %c0_25 = arith.constant 0 : index
    %46 = vector.load %arg12[%c0_24, %c0_25] : memref<32x512xf32, #tpu.memory_space<vmem>>, vector<32x256xf32>
    tpu.vector_store %arg12[%c0_24, %c0_25], %45 {strides = array<i32>} : memref<32x512xf32, #tpu.memory_space<vmem>>, vector<32x256xf32>,
    %c1 = arith.constant 1 : index
    %c0_26 = arith.constant 0 : index
    %c0_27 = arith.constant 0 : index
    %47 = vector.load %arg1[%c1, %c0_26, %c0_27] : memref<2x4x256xf32, #tpu.memory_space<vmem>>, vector<1x4x256xf32>
    %48 = vector.shape_cast %47 : vector<1x4x256xf32> to vector<4x256xf32>
    %49 = vector.extract_strided_slice %0 {offsets = [0, 0], sizes = [32, 1], strides = [1, 1]} : vector<32x4xf32> to vector<32x1xf32>
    %50 = vector.extract_strided_slice %48 {offsets = [0, 0], sizes = [1, 256], strides = [1, 1]} : vector<4x256xf32> to vector<1x256xf32>
    %51 = vector.broadcast %49 : vector<32x1xf32> to vector<32x256xf32>
    %52 = vector.broadcast %50 : vector<1x256xf32> to vector<32x256xf32>
    %53 = arith.mulf %51, %52 : vector<32x256xf32>
    %54 = vector.broadcast %1 : vector<32x1xf32> to vector<32x256xf32>
    %55 = arith.addf %54, %53 : vector<32x256xf32>
    %56 = vector.extract_strided_slice %0 {offsets = [0, 1], sizes = [32, 1], strides = [1, 1]} : vector<32x4xf32> to vector<32x1xf32>
    %57 = vector.extract_strided_slice %48 {offsets = [1, 0], sizes = [1, 256], strides = [1, 1]} : vector<4x256xf32> to vector<1x256xf32>
    %58 = vector.broadcast %56 : vector<32x1xf32> to vector<32x256xf32>
    %59 = vector.broadcast %57 : vector<1x256xf32> to vector<32x256xf32>
    %60 = arith.mulf %58, %59 : vector<32x256xf32>
    %61 = arith.addf %55, %60 : vector<32x256xf32>
    %62 = vector.extract_strided_slice %0 {offsets = [0, 2], sizes = [32, 1], strides = [1, 1]} : vector<32x4xf32> to vector<32x1xf32>
    %63 = vector.extract_strided_slice %48 {offsets = [2, 0], sizes = [1, 256], strides = [1, 1]} : vector<4x256xf32> to vector<1x256xf32>
    %64 = vector.broadcast %62 : vector<32x1xf32> to vector<32x256xf32>
    %65 = vector.broadcast %63 : vector<1x256xf32> to vector<32x256xf32>
    %66 = arith.mulf %64, %65 : vector<32x256xf32>
    %67 = arith.addf %61, %66 : vector<32x256xf32>
    %68 = vector.extract_strided_slice %0 {offsets = [0, 3], sizes = [32, 1], strides = [1, 1]} : vector<32x4xf32> to vector<32x1xf32>
    %69 = vector.extract_strided_slice %48 {offsets = [3, 0], sizes = [1, 256], strides = [1, 1]} : vector<4x256xf32> to vector<1x256xf32>
    %70 = vector.broadcast %68 : vector<32x1xf32> to vector<32x256xf32>
    %71 = vector.broadcast %69 : vector<1x256xf32> to vector<32x256xf32>
    %72 = arith.mulf %70, %71 : vector<32x256xf32>
    %73 = arith.addf %67, %72 : vector<32x256xf32>
    %c1_28 = arith.constant 1 : index
    %c0_29 = arith.constant 0 : index
    %c0_30 = arith.constant 0 : index
    %74 = vector.load %arg11[%c1_28, %c0_29, %c0_30] : memref<2x32x256xf32, #tpu.memory_space<vmem>>, vector<1x32x256xf32>
    %75 = vector.shape_cast %74 : vector<1x32x256xf32> to vector<32x256xf32>
    %76 = vector.shape_cast %73 : vector<32x256xf32> to vector<1x32x256xf32>
    tpu.vector_store %arg11[%c1_28, %c0_29, %c0_30], %76 {strides = array<i32>} : memref<2x32x256xf32, #tpu.memory_space<vmem>>, vector<1x32x256xf32>,
    %c0_31 = arith.constant 0 : index
    %c1_32 = arith.constant 1 : index
    %77 = vector.load %arg10[%c0_31, %c1_32] : memref<32x2xf32, #tpu.memory_space<vmem>>, vector<32x1xf32>
    %78 = vector.broadcast %77 : vector<32x1xf32> to vector<32x256xf32>
    %79 = arith.mulf %73, %78 : vector<32x256xf32>
    %cst_33 = arith.constant 0.000000e+00 : f32
    %80 = vector.broadcast %cst_33 : f32 to vector<32x256xf32>
    %81 = arith.maximumf %79, %80 : vector<32x256xf32>
    %c0_34 = arith.constant 0 : index
    %c256 = arith.constant 256 : index
    %82 = vector.load %arg12[%c0_34, %c256] : memref<32x512xf32, #tpu.memory_space<vmem>>, vector<32x256xf32>
    tpu.vector_store %arg12[%c0_34, %c256], %81 {strides = array<i32>} : memref<32x512xf32, #tpu.memory_space<vmem>>, vector<32x256xf32>,
    %c0_35 = arith.constant 0 : index
    %c0_36 = arith.constant 0 : index
    %83 = vector.load %arg12[%c0_35, %c0_36] : memref<32x512xf32, #tpu.memory_space<vmem>>, vector<32x512xf32>
    %cst_37 = arith.constant dense<0.000000e+00> : vector<2x512xf32>
    %84 = tpu.matmul %2, %83, %cst_37 {dimension_numbers = #tpu.dot_dimension_numbers<[1], [0], [0], [1], [0, 0, 1, 1], [], []>} : vector<2x32xf32>, vector<32x512xf32>, vector<2x512xf32> -> vector<2x512xf32>
    %85 = vector.broadcast %3 : vector<2x1xf32> to vector<2x512xf32>
    %86 = arith.addf %84, %85 : vector<2x512xf32>
    %87 = vector.extract_strided_slice %86 {offsets = [0, 0], sizes = [2, 256], strides = [1, 1]} : vector<2x512xf32> to vector<2x256xf32>
    %cst_38 = arith.constant dense<0xFF800000> : vector<2xf32>
    %88 = vector.multi_reduction <maximumf>, %87, %cst_38 [1] : vector<2x256xf32> to vector<2xf32>
    %89 = vector.shape_cast %88 : vector<2xf32> to vector<2x1xf32>
    %90 = vector.broadcast %89 : vector<2x1xf32> to vector<2x256xf32>
    %91 = arith.subf %87, %90 : vector<2x256xf32>
    %92 = math.exp %91 : vector<2x256xf32>
    %cst_39 = arith.constant dense<0.000000e+00> : vector<2xf32>
    %93 = vector.multi_reduction <add>, %92, %cst_39 [1] : vector<2x256xf32> to vector<2xf32>
    %94 = vector.shape_cast %93 : vector<2xf32> to vector<2x1xf32>
    %c0_40 = arith.constant 0 : index
    %c0_41 = arith.constant 0 : index
    %c0_42 = arith.constant 0 : index
    %95 = vector.load %arg11[%c0_40, %c0_41, %c0_42] : memref<2x32x256xf32, #tpu.memory_space<vmem>>, vector<1x32x256xf32>
    %96 = vector.shape_cast %95 : vector<1x32x256xf32> to vector<32x256xf32>
    %cst_43 = arith.constant dense<0.000000e+00> : vector<2x32xf32>
    %97 = tpu.matmul %92, %96, %cst_43 {dimension_numbers = #tpu.dot_dimension_numbers<[1], [1], [0], [0], [0, 0, 1, 0], [], []>} : vector<2x256xf32>, vector<32x256xf32>, vector<2x32xf32> -> vector<2x32xf32>
    %98 = tpu.reciprocal %94 {approx = true} : vector<2x1xf32> -> vector<2x1xf32>
    %99 = arith.mulf %94, %98 : vector<2x1xf32>
    %cst_44 = arith.constant 2.000000e+00 : f32
    %100 = vector.broadcast %cst_44 : f32 to vector<2x1xf32>
    %101 = arith.subf %100, %99 : vector<2x1xf32>
    %102 = arith.mulf %98, %101 : vector<2x1xf32>
    %103 = vector.broadcast %102 : vector<2x1xf32> to vector<2x32xf32>
    %104 = arith.mulf %97, %103 : vector<2x32xf32>
    %c0_45 = arith.constant 0 : index
    %c0_46 = arith.constant 0 : index
    %c0_47 = arith.constant 0 : index
    %105 = vector.load %arg9[%c0_45, %c0_46, %c0_47] : memref<2x2x32xf32, #tpu.memory_space<vmem>>, vector<1x2x32xf32>
    %106 = vector.shape_cast %105 : vector<1x2x32xf32> to vector<2x32xf32>
    %107 = vector.shape_cast %104 : vector<2x32xf32> to vector<1x2x32xf32>
    tpu.vector_store %arg9[%c0_45, %c0_46, %c0_47], %107 {strides = array<i32>} : memref<2x2x32xf32, #tpu.memory_space<vmem>>, vector<1x2x32xf32>,
    %108 = vector.extract_strided_slice %86 {offsets = [0, 256], sizes = [2, 256], strides = [1, 1]} : vector<2x512xf32> to vector<2x256xf32>
    %cst_48 = arith.constant dense<0xFF800000> : vector<2xf32>
    %109 = vector.multi_reduction <maximumf>, %108, %cst_48 [1] : vector<2x256xf32> to vector<2xf32>
    %110 = vector.shape_cast %109 : vector<2xf32> to vector<2x1xf32>
    %111 = vector.broadcast %110 : vector<2x1xf32> to vector<2x256xf32>
    %112 = arith.subf %108, %111 : vector<2x256xf32>
    %113 = math.exp %112 : vector<2x256xf32>
    %cst_49 = arith.constant dense<0.000000e+00> : vector<2xf32>
    %114 = vector.multi_reduction <add>, %113, %cst_49 [1] : vector<2x256xf32> to vector<2xf32>
    %115 = vector.shape_cast %114 : vector<2xf32> to vector<2x1xf32>
    %c1_50 = arith.constant 1 : index
    %c0_51 = arith.constant 0 : index
    %c0_52 = arith.constant 0 : index
    %116 = vector.load %arg11[%c1_50, %c0_51, %c0_52] : memref<2x32x256xf32, #tpu.memory_space<vmem>>, vector<1x32x256xf32>
    %117 = vector.shape_cast %116 : vector<1x32x256xf32> to vector<32x256xf32>
    %cst_53 = arith.constant dense<0.000000e+00> : vector<2x32xf32>
    %118 = tpu.matmul %113, %117, %cst_53 {dimension_numbers = #tpu.dot_dimension_numbers<[1], [1], [0], [0], [0, 0, 1, 0], [], []>} : vector<2x256xf32>, vector<32x256xf32>, vector<2x32xf32> -> vector<2x32xf32>
    %119 = tpu.reciprocal %115 {approx = true} : vector<2x1xf32> -> vector<2x1xf32>
    %120 = arith.mulf %115, %119 : vector<2x1xf32>
    %cst_54 = arith.constant 2.000000e+00 : f32
    %121 = vector.broadcast %cst_54 : f32 to vector<2x1xf32>
    %122 = arith.subf %121, %120 : vector<2x1xf32>
    %123 = arith.mulf %119, %122 : vector<2x1xf32>
    %124 = vector.broadcast %123 : vector<2x1xf32> to vector<2x32xf32>
    %125 = arith.mulf %118, %124 : vector<2x32xf32>
    %c1_55 = arith.constant 1 : index
    %c0_56 = arith.constant 0 : index
    %c0_57 = arith.constant 0 : index
    %126 = vector.load %arg9[%c1_55, %c0_56, %c0_57] : memref<2x2x32xf32, #tpu.memory_space<vmem>>, vector<1x2x32xf32>
    %127 = vector.shape_cast %126 : vector<1x2x32xf32> to vector<2x32xf32>
    %128 = vector.shape_cast %125 : vector<2x32xf32> to vector<1x2x32xf32>
    tpu.vector_store %arg9[%c1_55, %c0_56, %c0_57], %128 {strides = array<i32>} : memref<2x2x32xf32, #tpu.memory_space<vmem>>, vector<1x2x32xf32>,
    return
  }
  func.func @transform_0(%arg0: i32) -> (i32, i32, i32) {
    %c0_i32 = arith.constant 0 : i32
    %c0_i32_0 = arith.constant 0 : i32
    %c0_i32_1 = arith.constant 0 : i32
    return %arg0, %c0_i32, %c0_i32_0 : i32, i32, i32
  }
  func.func @transform_1(%arg0: i32) -> (i32, i32) {
    %c0_i32 = arith.constant 0 : i32
    %c0_i32_0 = arith.constant 0 : i32
    return %arg0, %c0_i32 : i32, i32
  }
  func.func @transform_2(%arg0: i32) -> (i32, i32) {
    %c0_i32 = arith.constant 0 : i32
    %c0_i32_0 = arith.constant 0 : i32
    %c0_i32_1 = arith.constant 0 : i32
    return %c0_i32, %c0_i32_0 : i32, i32
  }
  func.func @transform_3(%arg0: i32) -> (i32, i32) {
    %c0_i32 = arith.constant 0 : i32
    %c0_i32_0 = arith.constant 0 : i32
    %c0_i32_1 = arith.constant 0 : i32
    return %c0_i32, %c0_i32_0 : i32, i32
  }
  func.func @transform_4(%arg0: i32) -> (i32, i32) {
    %c0_i32 = arith.constant 0 : i32
    %c0_i32_0 = arith.constant 0 : i32
    %c0_i32_1 = arith.constant 0 : i32
    return %c0_i32, %c0_i32_0 : i32, i32
  }
  func.func @transform_5(%arg0: i32) -> (i32, i32) {
    %c0_i32 = arith.constant 0 : i32
    %c0_i32_0 = arith.constant 0 : i32
    %c0_i32_1 = arith.constant 0 : i32
    return %c0_i32, %c0_i32_0 : i32, i32
  }
  func.func @transform_6(%arg0: i32) -> (i32, i32) {
    %c0_i32 = arith.constant 0 : i32
    %c0_i32_0 = arith.constant 0 : i32
    %c0_i32_1 = arith.constant 0 : i32
    return %c0_i32, %c0_i32_0 : i32, i32
  }
  func.func @transform_7(%arg0: i32) -> (i32, i32) {
    %c0_i32 = arith.constant 0 : i32
    %c0_i32_0 = arith.constant 0 : i32
    %c0_i32_1 = arith.constant 0 : i32
    return %c0_i32, %c0_i32_0 : i32, i32
  }
  func.func @transform_8(%arg0: i32) -> (i32, i32, i32) {
    %c0_i32 = arith.constant 0 : i32
    %c0_i32_0 = arith.constant 0 : i32
    %c0_i32_1 = arith.constant 0 : i32
    return %arg0, %c0_i32, %c0_i32_0 : i32, i32, i32
  }
}

</mosaic_0001>

<llo_original>
// kernel: attention_forward.1
$region0: #{attention_forward.1}
  #allocation0 [shape = 'u32[]', space=smem, size = 0x4, offset = 0x4, fixed_abs, tag = 'smem constant byte address 0x4 - core index']
  #allocation1 [shape = 'u32[144,128]{1,0:T(1,128)}', space=vmem, size = 0x12000, scoped, tag = 'internal scratch']
  #allocation2 [shape = 'f32[32,2]{1,0:T(8,128)}', space=vmem, size = 0x4000, scoped, tag = 'scratch operand']
  #allocation3 [shape = 'f32[2,32,256]{2,1,0:T(8,128)}', space=vmem, size = 0x10000, scoped, tag = 'scratch operand']
  #allocation4 [shape = 'f32[32,512]{1,0:T(8,128)}', space=vmem, size = 0x10000, scoped, tag = 'scratch operand']
  %s0 = inlined_call_operand.vmem [shape: f32[2,4,256], index: 0, kind: input, shape index: {}]
  %s1 = inlined_call_operand.vmem [shape: f32[2,32], index: 1, kind: input, shape index: {}]
  %s2 = inlined_call_operand.vmem [shape: f32[32,4], index: 2, kind: input, shape index: {}]
  %s3 = inlined_call_operand.vmem [shape: f32[32,1], index: 3, kind: input, shape index: {}]
  %s4 = inlined_call_operand.vmem [shape: f32[32,32], index: 4, kind: input, shape index: {}]
  %s5 = inlined_call_operand.vmem [shape: f32[32,1], index: 5, kind: input, shape index: {}]
  %s6 = inlined_call_operand.vmem [shape: f32[2,32], index: 6, kind: input, shape index: {}]
  %s7 = inlined_call_operand.vmem [shape: f32[2,1], index: 7, kind: input, shape index: {}]
  %s8 = inlined_call_operand.vmem [shape: f32[2,2,32], index: 8, kind: output, shape index: {}]
  %s9 = sld [smem:[#allocation0]]
  $region42: #{attention_forward.1} parent=0
    _
  %s11 = ssub.s32 1, %s9
  %s12 = scalar_select 0, %s11, %s9
  // Predicated region
  $region2: #{attention_forward.1} parent=0 // pred_check
    _
  $region3: #{attention_forward.1} parent=0 // pred_check_branch
    %14 = sbr.rel (0) target = $region5
  $region4: #{attention_forward.1} parent=0 // pred_region
    _
  $region5: #{attention_forward.1} parent=0 // pred_fallthru
    _
  // Predicated region
  $region6: #{attention_forward.1} parent=0 // pred_check
    _
  $region7: #{attention_forward.1} parent=0 // pred_check_branch
    %16 = sbr.rel (0) target = $region9
  $region8: #{attention_forward.1} parent=0 // pred_region
    _
  $region9: #{attention_forward.1} parent=0 // pred_fallthru
    _
  // Predicated region
  $region10: #{attention_forward.1} parent=0 // pred_check
    _
  $region11: #{attention_forward.1} parent=0 // pred_check_branch
    %18 = sbr.rel (0) target = $region13
  $region12: #{attention_forward.1} parent=0 // pred_region
    _
  $region13: #{attention_forward.1} parent=0 // pred_fallthru
    _
  // Predicated region
  $region14: #{attention_forward.1} parent=0 // pred_check
    _
  $region15: #{attention_forward.1} parent=0 // pred_check_branch
    %20 = sbr.rel (0) target = $region17
  $region16: #{attention_forward.1} parent=0 // pred_region
    _
  $region17: #{attention_forward.1} parent=0 // pred_fallthru
    _
  // Predicated region
  $region18: #{attention_forward.1} parent=0 // pred_check
    _
  $region19: #{attention_forward.1} parent=0 // pred_check_branch
    %22 = sbr.rel (0) target = $region21
  $region20: #{attention_forward.1} parent=0 // pred_region
    _
  $region21: #{attention_forward.1} parent=0 // pred_fallthru
    _
  // Predicated region
  $region22: #{attention_forward.1} parent=0 // pred_check
    _
  $region23: #{attention_forward.1} parent=0 // pred_check_branch
    %24 = sbr.rel (0) target = $region25
  $region24: #{attention_forward.1} parent=0 // pred_region
    _
  $region25: #{attention_forward.1} parent=0 // pred_fallthru
    _
  // Predicated region
  $region26: #{attention_forward.1} parent=0 // pred_check
    _
  $region27: #{attention_forward.1} parent=0 // pred_check_branch
    %26 = sbr.rel (0) target = $region29
  $region28: #{attention_forward.1} parent=0 // pred_region
    _
  $region29: #{attention_forward.1} parent=0 // pred_fallthru
    _
  // Predicated region
  $region30: #{attention_forward.1} parent=0 // pred_check
    _
  $region31: #{attention_forward.1} parent=0 // pred_check_branch
    %28 = sbr.rel (0) target = $region33
  $region32: #{attention_forward.1} parent=0 // pred_region
    _
  $region33: #{attention_forward.1} parent=0 // pred_fallthru
    _
  %v29 = vld [vmem:[%s2] sm:$0xff]
  %v30 = vld [vmem:[%s2 + $0x8] sm:$0xff]
  %v31 = vld [vmem:[%s2 + $0x10] sm:$0xff]
  %v32 = vld [vmem:[%s2 + $0x18] sm:$0xff]
  %v33 = vld [vmem:[%s3] sm:$0xff]
  %v34 = vld [vmem:[%s3 + $0x8] sm:$0xff]
  %v35 = vld [vmem:[%s3 + $0x10] sm:$0xff]
  %v36 = vld [vmem:[%s3 + $0x18] sm:$0xff]
  %v37 = vld [vmem:[%s6] sm:$0x3]
  %v38 = vld [vmem:[%s7] sm:$0x3]
  %v39 = vld [vmem:[%s4] sm:$0xff]
  %v40 = vld [vmem:[%s4 + $0x8] sm:$0xff]
  %v41 = vld [vmem:[%s4 + $0x10] sm:$0xff]
  %v42 = vld [vmem:[%s4 + $0x18] sm:$0xff]
  %v43 = vld [vmem:[%s1] sm:$0x3]
  %v44 = vld [vmem:[%s5] sm:$0xff]
  %v45 = vld [vmem:[%s5 + $0x8] sm:$0xff]
  %v46 = vld [vmem:[%s5 + $0x10] sm:$0xff]
  %v47 = vld [vmem:[%s5 + $0x18] sm:$0xff]
  %49 = vset.pattern.permute.xlu0 0
  %50 = vperm.xlu0 %49, %v44
  %v51 = vpop.permute.xlu0 %50
  %54 = vset.pattern.permute.xlu0 0
  %55 = vperm.xlu0 %54, %v45
  %v56 = vpop.permute.xlu0 %55
  %59 = vset.pattern.permute.xlu0 0
  %60 = vperm.xlu0 %59, %v46
  %v61 = vpop.permute.xlu0 %60
  %64 = vset.pattern.permute.xlu0 0
  %65 = vperm.xlu0 %64, %v47
  %v66 = vpop.permute.xlu0 %65
  %vm68 = vcmask 261120
  %v70 = vsel %vm68, %v39, 0
  %v73 = vsel %vm68, %v40, 0
  %v76 = vsel %vm68, %v41, 0
  %v79 = vsel %vm68, %v42, 0
  %v82 = vsel %vm68, %v43, 0
  %84 = vmatprep.subr.mxu0 0.0
  %85 = vmatpush1.xpose.msra.mxu0 %v82
  %86 = vmatprep.subr.mxu0 0.0
  %87 = vmatpush1.xpose.msra.mxu0 0.0
  %88 = vmatprep.subr.mxu0 0.0
  %89 = vmatpush1.xpose.msra.mxu0 0.0
  %90 = vmatprep.subr.mxu0 0.0
  %91 = vmatpush1.xpose.msra.mxu0 0.0
  %92 = vmatprep.subr.mxu0 0.0
  %93 = vmatpush1.xpose.msra.mxu0 0.0
  %94 = vmatprep.subr.mxu0 0.0
  %95 = vmatpush1.xpose.msra.mxu0 0.0
  %96 = vmatprep.subr.mxu0 0.0
  %97 = vmatpush1.xpose.msra.mxu0 0.0
  %98 = vmatprep.subr.mxu0 0.0
  %99 = vmatpush1.xpose.msra.mxu0 0.0
  %100 = vmatprep.subr.mxu0 0.0
  %101 = vmatpush1.xpose.msra.mxu0 0.0
  %102 = vmatprep.subr.mxu0 0.0
  %103 = vmatpush1.xpose.msra.mxu0 0.0
  %104 = vmatprep.subr.mxu0 0.0
  %105 = vmatpush1.xpose.msra.mxu0 0.0
  %106 = vmatprep.subr.mxu0 0.0
  %107 = vmatpush1.xpose.msra.mxu0 0.0
  %108 = vmatprep.subr.mxu0 0.0
  %109 = vmatpush1.xpose.msra.mxu0 0.0
  %110 = vmatprep.subr.mxu0 0.0
  %111 = vmatpush1.xpose.msra.mxu0 0.0
  %112 = vmatprep.subr.mxu0 0.0
  %113 = vmatpush1.xpose.msra.mxu0 0.0
  %114 = vmatprep.subr.mxu0 0.0
  %115 = vmatpush1.xpose.msra.mxu0 0.0
  %116 = vmatprep.subr.mxu0 0.0
  %117 = vmatpush1.xpose.msra.mxu0 0.0
  %118 = vmatprep.subr.mxu0 0.0
  %119 = vmatpush1.xpose.msra.mxu0 0.0
  %120 = vmatprep.subr.mxu0 0.0
  %121 = vmatpush1.xpose.msra.mxu0 0.0
  %122 = vmatprep.subr.mxu0 0.0
  %123 = vmatpush1.xpose.msra.mxu0 0.0
  %124 = vmatprep.subr.mxu0 0.0
  %125 = vmatpush1.xpose.msra.mxu0 0.0
  %126 = vmatprep.subr.mxu0 0.0
  %127 = vmatpush1.xpose.msra.mxu0 0.0
  %128 = vmatprep.subr.mxu0 0.0
  %129 = vmatpush1.xpose.msra.mxu0 0.0
  %130 = vmatprep.subr.mxu0 0.0
  %131 = vmatpush1.xpose.msra.mxu0 0.0
  %132 = vmatprep.subr.mxu0 0.0
  %133 = vmatpush1.xpose.msra.mxu0 0.0
  %134 = vmatprep.subr.mxu0 0.0
  %135 = vmatpush1.xpose.msra.mxu0 0.0
  %136 = vmatprep.subr.mxu0 0.0
  %137 = vmatpush1.xpose.msra.mxu0 0.0
  %138 = vmatprep.subr.mxu0 0.0
  %139 = vmatpush1.xpose.msra.mxu0 0.0
  %140 = vmatprep.subr.mxu0 0.0
  %141 = vmatpush1.xpose.msra.mxu0 0.0
  %142 = vmatprep.subr.mxu0 0.0
  %143 = vmatpush1.xpose.msra.mxu0 0.0
  %144 = vmatprep.subr.mxu0 0.0
  %145 = vmatpush1.xpose.msra.mxu0 0.0
  %146 = vmatprep.subr.mxu0 0.0
  %147 = vmatpush1.xpose.msra.mxu0 0.0
  %148 = vmatprep.mubr.f32.mxu0 0.0
  %149 = vmatmul.mubr.f32.gmra.mrb[0].mxu0 %v70
  %v150 = vpop.f32.mrb[0].mxu0
  %v151 = vadd.f32 %v51, %v150
  %v152 = vpop.f32.mrb[0].mxu0
  %153 = vmatprep.mubr.f32.mxu0 0.0
  %154 = vmatmul.mubr.f32.gmra.mrb[0].mxu0 %v73
  %v155 = vpop.f32.mrb[0].mxu0
  %v156 = vadd.f32 %v56, %v155
  %v157 = vpop.f32.mrb[0].mxu0
  %158 = vmatprep.mubr.f32.mxu0 0.0
  %159 = vmatmul.mubr.f32.gmra.mrb[0].mxu0 %v76
  %v160 = vpop.f32.mrb[0].mxu0
  %v161 = vadd.f32 %v61, %v160
  %v162 = vpop.f32.mrb[0].mxu0
  %163 = vmatprep.mubr.f32.mxu0 0.0
  %164 = vmatmul.mubr.f32.gmra.mrb[0].mxu0 %v79
  %v165 = vpop.f32.mrb[0].mxu0
  %v166 = vadd.f32 %v66, %v165
  %v167 = vpop.f32.mrb[0].mxu0
  %168 = vdwg.mxu0
  %vm169 = vcmask 15360
  %170 = vst.msk [vmem:[#allocation2] sm:$0xff] %vm169, %v151
  %171 = vst.msk [vmem:[#allocation2 + $0x8] sm:$0xff] %vm169, %v156
  %172 = vst.msk [vmem:[#allocation2 + $0x10] sm:$0xff] %vm169, %v161
  %173 = vst.msk [vmem:[#allocation2 + $0x18] sm:$0xff] %vm169, %v166
  %v174 = vld [vmem:[%s0] sm:$0xff]
  %176 = vset.pattern.permute.xlu0 0
  %177 = vperm.xlu0 %176, %v29
  %v178 = vpop.permute.xlu0 %177
  %181 = vset.pattern.permute.xlu0 0
  %182 = vperm.xlu0 %181, %v30
  %v183 = vpop.permute.xlu0 %182
  %186 = vset.pattern.permute.xlu0 0
  %187 = vperm.xlu0 %186, %v31
  %v188 = vpop.permute.xlu0 %187
  %191 = vset.pattern.permute.xlu0 0
  %192 = vperm.xlu0 %191, %v32
  %v193 = vpop.permute.xlu0 %192
  %v196 = vlaneseq
  %v197 = vshrl.u32 %v196, 7
  %v198 = vsub.s32 0, %v197
  %v199 = vrot.slane %v174, %v198
  %v200 = vlaneseq
  %v201 = vshrl.u32 %v200, 7
  %v202 = vsub.s32 4, %v201
  %v203 = vrot.slane %v174, %v202
  %v206 = vlaneseq
  %v207 = vshrl.u32 %v206, 7
  %v208 = vsub.s32 0, %v207
  %v209 = vrot.slane %v199, %v208
  %v210 = vlaneseq
  %v211 = vshrl.u32 %v210, 7
  %v212 = vsub.s32 0, %v211
  %v213 = vrot.slane %v203, %v212
  %v214 = vmul.f32 %v178, %v209
  %v215 = vmul.f32 %v178, %v213
  %v216 = vmul.f32 %v183, %v209
  %v217 = vmul.f32 %v183, %v213
  %v218 = vmul.f32 %v188, %v209
  %v219 = vmul.f32 %v188, %v213
  %v220 = vmul.f32 %v193, %v209
  %v221 = vmul.f32 %v193, %v213
  %223 = vset.pattern.permute.xlu0 0
  %224 = vperm.xlu0 %223, %v33
  %v225 = vpop.permute.xlu0 %224
  %228 = vset.pattern.permute.xlu0 0
  %229 = vperm.xlu0 %228, %v34
  %v230 = vpop.permute.xlu0 %229
  %233 = vset.pattern.permute.xlu0 0
  %234 = vperm.xlu0 %233, %v35
  %v235 = vpop.permute.xlu0 %234
  %238 = vset.pattern.permute.xlu0 0
  %239 = vperm.xlu0 %238, %v36
  %v240 = vpop.permute.xlu0 %239
  %v242 = vadd.f32 %v225, %v214
  %v243 = vadd.f32 %v225, %v215
  %v244 = vadd.f32 %v230, %v216
  %v245 = vadd.f32 %v230, %v217
  %v246 = vadd.f32 %v235, %v218
  %v247 = vadd.f32 %v235, %v219
  %v248 = vadd.f32 %v240, %v220
  %v249 = vadd.f32 %v240, %v221
  %250 = vset.pattern.permute.xlu0 1
  %251 = vperm.xlu0 %250, %v29
  %v252 = vpop.permute.xlu0 %251
  %254 = vset.pattern.permute.xlu0 1
  %255 = vperm.xlu0 %254, %v30
  %v256 = vpop.permute.xlu0 %255
  %258 = vset.pattern.permute.xlu0 1
  %259 = vperm.xlu0 %258, %v31
  %v260 = vpop.permute.xlu0 %259
  %262 = vset.pattern.permute.xlu0 1
  %263 = vperm.xlu0 %262, %v32
  %v264 = vpop.permute.xlu0 %263
  %v266 = vlaneseq
  %v267 = vshrl.u32 %v266, 7
  %v268 = vsub.s32 1, %v267
  %v269 = vrot.slane %v174, %v268
  %v270 = vlaneseq
  %v271 = vshrl.u32 %v270, 7
  %v272 = vsub.s32 5, %v271
  %v273 = vrot.slane %v174, %v272
  %v276 = vlaneseq
  %v277 = vshrl.u32 %v276, 7
  %v278 = vsub.s32 1, %v277
  %v279 = vrot.slane %v269, %v278
  %v280 = vlaneseq
  %v281 = vshrl.u32 %v280, 7
  %v282 = vsub.s32 1, %v281
  %v283 = vrot.slane %v273, %v282
  %v284 = vmul.f32 %v252, %v279
  %v285 = vmul.f32 %v252, %v283
  %v286 = vmul.f32 %v256, %v279
  %v287 = vmul.f32 %v256, %v283
  %v288 = vmul.f32 %v260, %v279
  %v289 = vmul.f32 %v260, %v283
  %v290 = vmul.f32 %v264, %v279
  %v291 = vmul.f32 %v264, %v283
  %v292 = vadd.f32 %v242, %v284
  %v293 = vadd.f32 %v243, %v285
  %v294 = vadd.f32 %v244, %v286
  %v295 = vadd.f32 %v245, %v287
  %v296 = vadd.f32 %v246, %v288
  %v297 = vadd.f32 %v247, %v289
  %v298 = vadd.f32 %v248, %v290
  %v299 = vadd.f32 %v249, %v291
  %300 = vset.pattern.permute.xlu0 2
  %301 = vperm.xlu0 %300, %v29
  %v302 = vpop.permute.xlu0 %301
  %304 = vset.pattern.permute.xlu0 2
  %305 = vperm.xlu0 %304, %v30
  %v306 = vpop.permute.xlu0 %305
  %308 = vset.pattern.permute.xlu0 2
  %309 = vperm.xlu0 %308, %v31
  %v310 = vpop.permute.xlu0 %309
  %312 = vset.pattern.permute.xlu0 2
  %313 = vperm.xlu0 %312, %v32
  %v314 = vpop.permute.xlu0 %313
  %v316 = vlaneseq
  %v317 = vshrl.u32 %v316, 7
  %v318 = vsub.s32 2, %v317
  %v319 = vrot.slane %v174, %v318
  %v320 = vlaneseq
  %v321 = vshrl.u32 %v320, 7
  %v322 = vsub.s32 6, %v321
  %v323 = vrot.slane %v174, %v322
  %v326 = vlaneseq
  %v327 = vshrl.u32 %v326, 7
  %v328 = vsub.s32 2, %v327
  %v329 = vrot.slane %v319, %v328
  %v330 = vlaneseq
  %v331 = vshrl.u32 %v330, 7
  %v332 = vsub.s32 2, %v331
  %v333 = vrot.slane %v323, %v332
  %v334 = vmul.f32 %v302, %v329
  %v335 = vmul.f32 %v302, %v333
  %v336 = vmul.f32 %v306, %v329
  %v337 = vmul.f32 %v306, %v333
  %v338 = vmul.f32 %v310, %v329
  %v339 = vmul.f32 %v310, %v333
  %v340 = vmul.f32 %v314, %v329
  %v341 = vmul.f32 %v314, %v333
  %v342 = vadd.f32 %v292, %v334
  %v343 = vadd.f32 %v293, %v335
  %v344 = vadd.f32 %v294, %v336
  %v345 = vadd.f32 %v295, %v337
  %v346 = vadd.f32 %v296, %v338
  %v347 = vadd.f32 %v297, %v339
  %v348 = vadd.f32 %v298, %v340
  %v349 = vadd.f32 %v299, %v341
  %350 = vset.pattern.permute.xlu0 3
  %351 = vperm.xlu0 %350, %v29
  %v352 = vpop.permute.xlu0 %351
  %354 = vset.pattern.permute.xlu0 3
  %355 = vperm.xlu0 %354, %v30
  %v356 = vpop.permute.xlu0 %355
  %358 = vset.pattern.permute.xlu0 3
  %359 = vperm.xlu0 %358, %v31
  %v360 = vpop.permute.xlu0 %359
  %362 = vset.pattern.permute.xlu0 3
  %363 = vperm.xlu0 %362, %v32
  %v364 = vpop.permute.xlu0 %363
  %v366 = vlaneseq
  %v367 = vshrl.u32 %v366, 7
  %v368 = vsub.s32 3, %v367
  %v369 = vrot.slane %v174, %v368
  %v370 = vlaneseq
  %v371 = vshrl.u32 %v370, 7
  %v372 = vsub.s32 7, %v371
  %v373 = vrot.slane %v174, %v372
  %v376 = vlaneseq
  %v377 = vshrl.u32 %v376, 7
  %v378 = vsub.s32 3, %v377
  %v379 = vrot.slane %v369, %v378
  %v380 = vlaneseq
  %v381 = vshrl.u32 %v380, 7
  %v382 = vsub.s32 3, %v381
  %v383 = vrot.slane %v373, %v382
  %v384 = vmul.f32 %v352, %v379
  %v385 = vmul.f32 %v352, %v383
  %v386 = vmul.f32 %v356, %v379
  %v387 = vmul.f32 %v356, %v383
  %v388 = vmul.f32 %v360, %v379
  %v389 = vmul.f32 %v360, %v383
  %v390 = vmul.f32 %v364, %v379
  %v391 = vmul.f32 %v364, %v383
  %v392 = vadd.f32 %v342, %v384
  %v393 = vadd.f32 %v343, %v385
  %v394 = vadd.f32 %v344, %v386
  %v395 = vadd.f32 %v345, %v387
  %v396 = vadd.f32 %v346, %v388
  %v397 = vadd.f32 %v347, %v389
  %v398 = vadd.f32 %v348, %v390
  %v399 = vadd.f32 %v349, %v391
  %400 = vst [vmem:[#allocation3] sm:$0xff] %v392
  %401 = vst [vmem:[#allocation3 + $0x8] sm:$0xff] %v393
  %402 = vst [vmem:[#allocation3 + $0x10] sm:$0xff] %v394
  %403 = vst [vmem:[#allocation3 + $0x18] sm:$0xff] %v395
  %404 = vst [vmem:[#allocation3 + $0x20] sm:$0xff] %v396
  %405 = vst [vmem:[#allocation3 + $0x28] sm:$0xff] %v397
  %406 = vst [vmem:[#allocation3 + $0x30] sm:$0xff] %v398
  %407 = vst [vmem:[#allocation3 + $0x38] sm:$0xff] %v399
  %v408 = vld [vmem:[#allocation2] sm:$0xff]
  %v409 = vld [vmem:[#allocation2 + $0x8] sm:$0xff]
  %v410 = vld [vmem:[#allocation2 + $0x10] sm:$0xff]
  %v411 = vld [vmem:[#allocation2 + $0x18] sm:$0xff]
  %413 = vset.pattern.permute.xlu0 0
  %414 = vperm.xlu0 %413, %v408
  %v415 = vpop.permute.xlu0 %414
  %418 = vset.pattern.permute.xlu0 0
  %419 = vperm.xlu0 %418, %v409
  %v420 = vpop.permute.xlu0 %419
  %423 = vset.pattern.permute.xlu0 0
  %424 = vperm.xlu0 %423, %v410
  %v425 = vpop.permute.xlu0 %424
  %428 = vset.pattern.permute.xlu0 0
  %429 = vperm.xlu0 %428, %v411
  %v430 = vpop.permute.xlu0 %429
  %v432 = vmul.f32 %v392, %v415
  %v433 = vmul.f32 %v393, %v415
  %v434 = vmul.f32 %v394, %v420
  %v435 = vmul.f32 %v395, %v420
  %v436 = vmul.f32 %v396, %v425
  %v437 = vmul.f32 %v397, %v425
  %v438 = vmul.f32 %v398, %v430
  %v439 = vmul.f32 %v399, %v430
  %v440 = vmax.f32 %v432, 0.0
  %v441 = vmax.f32 %v433, 0.0
  %v442 = vmax.f32 %v434, 0.0
  %v443 = vmax.f32 %v435, 0.0
  %v444 = vmax.f32 %v436, 0.0
  %v445 = vmax.f32 %v437, 0.0
  %v446 = vmax.f32 %v438, 0.0
  %v447 = vmax.f32 %v439, 0.0
  %448 = vst [vmem:[#allocation4] sm:$0xff] %v440
  %449 = vst [vmem:[#allocation4 + $0x8] sm:$0xff] %v441
  %450 = vst [vmem:[#allocation4 + $0x20] sm:$0xff] %v442
  %451 = vst [vmem:[#allocation4 + $0x28] sm:$0xff] %v443
  %452 = vst [vmem:[#allocation4 + $0x40] sm:$0xff] %v444
  %453 = vst [vmem:[#allocation4 + $0x48] sm:$0xff] %v445
  %454 = vst [vmem:[#allocation4 + $0x60] sm:$0xff] %v446
  %455 = vst [vmem:[#allocation4 + $0x68] sm:$0xff] %v447
  %s456 = scalar_lea.vmem %s0, 8
  %v457 = vld [vmem:[%s456] sm:$0xff]
  %v459 = vlaneseq
  %v460 = vshrl.u32 %v459, 7
  %v461 = vsub.s32 0, %v460
  %v462 = vrot.slane %v457, %v461
  %v463 = vlaneseq
  %v464 = vshrl.u32 %v463, 7
  %v465 = vsub.s32 4, %v464
  %v466 = vrot.slane %v457, %v465
  %v469 = vlaneseq
  %v470 = vshrl.u32 %v469, 7
  %v471 = vsub.s32 0, %v470
  %v472 = vrot.slane %v462, %v471
  %v473 = vlaneseq
  %v474 = vshrl.u32 %v473, 7
  %v475 = vsub.s32 0, %v474
  %v476 = vrot.slane %v466, %v475
  %v477 = vmul.f32 %v178, %v472
  %v478 = vmul.f32 %v178, %v476
  %v479 = vmul.f32 %v183, %v472
  %v480 = vmul.f32 %v183, %v476
  %v481 = vmul.f32 %v188, %v472
  %v482 = vmul.f32 %v188, %v476
  %v483 = vmul.f32 %v193, %v472
  %v484 = vmul.f32 %v193, %v476
  %v485 = vadd.f32 %v225, %v477
  %v486 = vadd.f32 %v225, %v478
  %v487 = vadd.f32 %v230, %v479
  %v488 = vadd.f32 %v230, %v480
  %v489 = vadd.f32 %v235, %v481
  %v490 = vadd.f32 %v235, %v482
  %v491 = vadd.f32 %v240, %v483
  %v492 = vadd.f32 %v240, %v484
  %v493 = vlaneseq
  %v494 = vshrl.u32 %v493, 7
  %v495 = vsub.s32 1, %v494
  %v496 = vrot.slane %v457, %v495
  %v497 = vlaneseq
  %v498 = vshrl.u32 %v497, 7
  %v499 = vsub.s32 5, %v498
  %v500 = vrot.slane %v457, %v499
  %v503 = vlaneseq
  %v504 = vshrl.u32 %v503, 7
  %v505 = vsub.s32 1, %v504
  %v506 = vrot.slane %v496, %v505
  %v507 = vlaneseq
  %v508 = vshrl.u32 %v507, 7
  %v509 = vsub.s32 1, %v508
  %v510 = vrot.slane %v500, %v509
  %v511 = vmul.f32 %v252, %v506
  %v512 = vmul.f32 %v252, %v510
  %v513 = vmul.f32 %v256, %v506
  %v514 = vmul.f32 %v256, %v510
  %v515 = vmul.f32 %v260, %v506
  %v516 = vmul.f32 %v260, %v510
  %v517 = vmul.f32 %v264, %v506
  %v518 = vmul.f32 %v264, %v510
  %v519 = vadd.f32 %v485, %v511
  %v520 = vadd.f32 %v486, %v512
  %v521 = vadd.f32 %v487, %v513
  %v522 = vadd.f32 %v488, %v514
  %v523 = vadd.f32 %v489, %v515
  %v524 = vadd.f32 %v490, %v516
  %v525 = vadd.f32 %v491, %v517
  %v526 = vadd.f32 %v492, %v518
  %v527 = vlaneseq
  %v528 = vshrl.u32 %v527, 7
  %v529 = vsub.s32 2, %v528
  %v530 = vrot.slane %v457, %v529
  %v531 = vlaneseq
  %v532 = vshrl.u32 %v531, 7
  %v533 = vsub.s32 6, %v532
  %v534 = vrot.slane %v457, %v533
  %v537 = vlaneseq
  %v538 = vshrl.u32 %v537, 7
  %v539 = vsub.s32 2, %v538
  %v540 = vrot.slane %v530, %v539
  %v541 = vlaneseq
  %v542 = vshrl.u32 %v541, 7
  %v543 = vsub.s32 2, %v542
  %v544 = vrot.slane %v534, %v543
  %v545 = vmul.f32 %v302, %v540
  %v546 = vmul.f32 %v302, %v544
  %v547 = vmul.f32 %v306, %v540
  %v548 = vmul.f32 %v306, %v544
  %v549 = vmul.f32 %v310, %v540
  %v550 = vmul.f32 %v310, %v544
  %v551 = vmul.f32 %v314, %v540
  %v552 = vmul.f32 %v314, %v544
  %v553 = vadd.f32 %v519, %v545
  %v554 = vadd.f32 %v520, %v546
  %v555 = vadd.f32 %v521, %v547
  %v556 = vadd.f32 %v522, %v548
  %v557 = vadd.f32 %v523, %v549
  %v558 = vadd.f32 %v524, %v550
  %v559 = vadd.f32 %v525, %v551
  %v560 = vadd.f32 %v526, %v552
  %v561 = vlaneseq
  %v562 = vshrl.u32 %v561, 7
  %v563 = vsub.s32 3, %v562
  %v564 = vrot.slane %v457, %v563
  %v565 = vlaneseq
  %v566 = vshrl.u32 %v565, 7
  %v567 = vsub.s32 7, %v566
  %v568 = vrot.slane %v457, %v567
  %v571 = vlaneseq
  %v572 = vshrl.u32 %v571, 7
  %v573 = vsub.s32 3, %v572
  %v574 = vrot.slane %v564, %v573
  %v575 = vlaneseq
  %v576 = vshrl.u32 %v575, 7
  %v577 = vsub.s32 3, %v576
  %v578 = vrot.slane %v568, %v577
  %v579 = vmul.f32 %v352, %v574
  %v580 = vmul.f32 %v352, %v578
  %v581 = vmul.f32 %v356, %v574
  %v582 = vmul.f32 %v356, %v578
  %v583 = vmul.f32 %v360, %v574
  %v584 = vmul.f32 %v360, %v578
  %v585 = vmul.f32 %v364, %v574
  %v586 = vmul.f32 %v364, %v578
  %v587 = vadd.f32 %v553, %v579
  %v588 = vadd.f32 %v554, %v580
  %v589 = vadd.f32 %v555, %v581
  %v590 = vadd.f32 %v556, %v582
  %v591 = vadd.f32 %v557, %v583
  %v592 = vadd.f32 %v558, %v584
  %v593 = vadd.f32 %v559, %v585
  %v594 = vadd.f32 %v560, %v586
  %s595 = scalar_lea.vmem [#allocation3], 64
  %596 = vst [vmem:[%s595] sm:$0xff] %v587
  %597 = vst [vmem:[%s595 + $0x8] sm:$0xff] %v588
  %598 = vst [vmem:[%s595 + $0x10] sm:$0xff] %v589
  %599 = vst [vmem:[%s595 + $0x18] sm:$0xff] %v590
  %600 = vst [vmem:[%s595 + $0x20] sm:$0xff] %v591
  %601 = vst [vmem:[%s595 + $0x28] sm:$0xff] %v592
  %602 = vst [vmem:[%s595 + $0x30] sm:$0xff] %v593
  %603 = vst [vmem:[%s595 + $0x38] sm:$0xff] %v594
  %v604 = vld [vmem:[#allocation2] sm:$0xff]
  %v605 = vld [vmem:[#allocation2 + $0x8] sm:$0xff]
  %v606 = vld [vmem:[#allocation2 + $0x10] sm:$0xff]
  %v607 = vld [vmem:[#allocation2 + $0x18] sm:$0xff]
  %609 = vset.pattern.permute.xlu0 1
  %610 = vperm.xlu0 %609, %v604
  %v611 = vpop.permute.xlu0 %610
  %614 = vset.pattern.permute.xlu0 1
  %615 = vperm.xlu0 %614, %v605
  %v616 = vpop.permute.xlu0 %615
  %619 = vset.pattern.permute.xlu0 1
  %620 = vperm.xlu0 %619, %v606
  %v621 = vpop.permute.xlu0 %620
  %624 = vset.pattern.permute.xlu0 1
  %625 = vperm.xlu0 %624, %v607
  %v626 = vpop.permute.xlu0 %625
  %v628 = vmul.f32 %v587, %v611
  %v629 = vmul.f32 %v588, %v611
  %v630 = vmul.f32 %v589, %v616
  %v631 = vmul.f32 %v590, %v616
  %v632 = vmul.f32 %v591, %v621
  %v633 = vmul.f32 %v592, %v621
  %v634 = vmul.f32 %v593, %v626
  %v635 = vmul.f32 %v594, %v626
  %v636 = vmax.f32 %v628, 0.0
  %v637 = vmax.f32 %v629, 0.0
  %v638 = vmax.f32 %v630, 0.0
  %v639 = vmax.f32 %v631, 0.0
  %v640 = vmax.f32 %v632, 0.0
  %v641 = vmax.f32 %v633, 0.0
  %v642 = vmax.f32 %v634, 0.0
  %v643 = vmax.f32 %v635, 0.0
  %644 = vst [vmem:[#allocation4 + $0x10] sm:$0xff] %v636
  %645 = vst [vmem:[#allocation4 + $0x18] sm:$0xff] %v637
  %646 = vst [vmem:[#allocation4 + $0x30] sm:$0xff] %v638
  %647 = vst [vmem:[#allocation4 + $0x38] sm:$0xff] %v639
  %648 = vst [vmem:[#allocation4 + $0x50] sm:$0xff] %v640
  %649 = vst [vmem:[#allocation4 + $0x58] sm:$0xff] %v641
  %650 = vst [vmem:[#allocation4 + $0x70] sm:$0xff] %v642
  %651 = vst [vmem:[#allocation4 + $0x78] sm:$0xff] %v643
  %v652 = vld [vmem:[#allocation4] sm:$0xff]
  %v653 = vld [vmem:[#allocation4 + $0x8] sm:$0xff]
  %v654 = vld [vmem:[#allocation4 + $0x10] sm:$0xff]
  %v655 = vld [vmem:[#allocation4 + $0x18] sm:$0xff]
  %v656 = vld [vmem:[#allocation4 + $0x20] sm:$0xff]
  %v657 = vld [vmem:[#allocation4 + $0x28] sm:$0xff]
  %v658 = vld [vmem:[#allocation4 + $0x30] sm:$0xff]
  %v659 = vld [vmem:[#allocation4 + $0x38] sm:$0xff]
  %v660 = vld [vmem:[#allocation4 + $0x40] sm:$0xff]
  %v661 = vld [vmem:[#allocation4 + $0x48] sm:$0xff]
  %v662 = vld [vmem:[#allocation4 + $0x50] sm:$0xff]
  %v663 = vld [vmem:[#allocation4 + $0x58] sm:$0xff]
  %v664 = vld [vmem:[#allocation4 + $0x60] sm:$0xff]
  %v665 = vld [vmem:[#allocation4 + $0x68] sm:$0xff]
  %v666 = vld [vmem:[#allocation4 + $0x70] sm:$0xff]
  %v667 = vld [vmem:[#allocation4 + $0x78] sm:$0xff]
  %669 = vset.pattern.permute.xlu0 0
  %670 = vperm.xlu0 %669, %v38
  %v671 = vpop.permute.xlu0 %670
  %v674 = vsel %vm68, %v37, 0
  %676 = vmatprep.subr.mxu0 %v653
  %677 = vmatpush1.msra.mxu0 %v652
  %678 = vmatprep.subr.mxu0 %v657
  %679 = vmatpush1.msra.mxu0 %v656
  %680 = vmatprep.subr.mxu0 %v661
  %681 = vmatpush1.msra.mxu0 %v660
  %682 = vmatprep.subr.mxu0 %v665
  %683 = vmatpush1.msra.mxu0 %v664
  %684 = vmatprep.subr.mxu0 0.0
  %685 = vmatpush1.msra.mxu0 0.0
  %686 = vmatprep.subr.mxu0 0.0
  %687 = vmatpush1.msra.mxu0 0.0
  %688 = vmatprep.subr.mxu0 0.0
  %689 = vmatpush1.msra.mxu0 0.0
  %690 = vmatprep.subr.mxu0 0.0
  %691 = vmatpush1.msra.mxu0 0.0
  %692 = vmatprep.subr.mxu0 0.0
  %693 = vmatpush1.msra.mxu0 0.0
  %694 = vmatprep.subr.mxu0 0.0
  %695 = vmatpush1.msra.mxu0 0.0
  %696 = vmatprep.subr.mxu0 0.0
  %697 = vmatpush1.msra.mxu0 0.0
  %698 = vmatprep.subr.mxu0 0.0
  %699 = vmatpush1.msra.mxu0 0.0
  %700 = vmatprep.subr.mxu0 0.0
  %701 = vmatpush1.msra.mxu0 0.0
  %702 = vmatprep.subr.mxu0 0.0
  %703 = vmatpush1.msra.mxu0 0.0
  %704 = vmatprep.subr.mxu0 0.0
  %705 = vmatpush1.msra.mxu0 0.0
  %706 = vmatprep.subr.mxu0 0.0
  %707 = vmatpush1.msra.mxu0 0.0
  %708 = vmatprep.subr.mxu0 0.0
  %709 = vmatpush1.msra.mxu0 0.0
  %710 = vmatprep.subr.mxu0 0.0
  %711 = vmatpush1.msra.mxu0 0.0
  %712 = vmatprep.subr.mxu0 0.0
  %713 = vmatpush1.msra.mxu0 0.0
  %714 = vmatprep.subr.mxu0 0.0
  %715 = vmatpush1.msra.mxu0 0.0
  %716 = vmatprep.subr.mxu0 0.0
  %717 = vmatpush1.msra.mxu0 0.0
  %718 = vmatprep.subr.mxu0 0.0
  %719 = vmatpush1.msra.mxu0 0.0
  %720 = vmatprep.subr.mxu0 0.0
  %721 = vmatpush1.msra.mxu0 0.0
  %722 = vmatprep.subr.mxu0 0.0
  %723 = vmatpush1.msra.mxu0 0.0
  %724 = vmatprep.subr.mxu0 0.0
  %725 = vmatpush1.msra.mxu0 0.0
  %726 = vmatprep.subr.mxu0 0.0
  %727 = vmatpush1.msra.mxu0 0.0
  %728 = vmatprep.subr.mxu0 0.0
  %729 = vmatpush1.msra.mxu0 0.0
  %730 = vmatprep.subr.mxu0 0.0
  %731 = vmatpush1.msra.mxu0 0.0
  %732 = vmatprep.subr.mxu0 0.0
  %733 = vmatpush1.msra.mxu0 0.0
  %734 = vmatprep.subr.mxu0 0.0
  %735 = vmatpush1.msra.mxu0 0.0
  %736 = vmatprep.subr.mxu0 0.0
  %737 = vmatpush1.msra.mxu0 0.0
  %738 = vmatprep.subr.mxu0 0.0
  %739 = vmatpush1.msra.mxu0 0.0
  %740 = vmatprep.mubr.f32.mxu0 0.0
  %741 = vmatmul.mubr.f32.gmra.mrb[0].mxu0 %v674
  %v742 = vpop.f32.mrb[0].mxu0
  %v743 = vadd.f32 %v671, %v742
  %v744 = vpop.f32.mrb[0].mxu0
  %v745 = vadd.f32 %v671, %v744
  %746 = vdwg.mxu0
  %747 = vmatprep.subr.mxu0 %v655
  %748 = vmatpush1.msra.mxu0 %v654
  %749 = vmatprep.subr.mxu0 %v659
  %750 = vmatpush1.msra.mxu0 %v658
  %751 = vmatprep.subr.mxu0 %v663
  %752 = vmatpush1.msra.mxu0 %v662
  %753 = vmatprep.subr.mxu0 %v667
  %754 = vmatpush1.msra.mxu0 %v666
  %755 = vmatprep.subr.mxu0 0.0
  %756 = vmatpush1.msra.mxu0 0.0
  %757 = vmatprep.subr.mxu0 0.0
  %758 = vmatpush1.msra.mxu0 0.0
  %759 = vmatprep.subr.mxu0 0.0
  %760 = vmatpush1.msra.mxu0 0.0
  %761 = vmatprep.subr.mxu0 0.0
  %762 = vmatpush1.msra.mxu0 0.0
  %763 = vmatprep.subr.mxu0 0.0
  %764 = vmatpush1.msra.mxu0 0.0
  %765 = vmatprep.subr.mxu0 0.0
  %766 = vmatpush1.msra.mxu0 0.0
  %767 = vmatprep.subr.mxu0 0.0
  %768 = vmatpush1.msra.mxu0 0.0
  %769 = vmatprep.subr.mxu0 0.0
  %770 = vmatpush1.msra.mxu0 0.0
  %771 = vmatprep.subr.mxu0 0.0
  %772 = vmatpush1.msra.mxu0 0.0
  %773 = vmatprep.subr.mxu0 0.0
  %774 = vmatpush1.msra.mxu0 0.0
  %775 = vmatprep.subr.mxu0 0.0
  %776 = vmatpush1.msra.mxu0 0.0
  %777 = vmatprep.subr.mxu0 0.0
  %778 = vmatpush1.msra.mxu0 0.0
  %779 = vmatprep.subr.mxu0 0.0
  %780 = vmatpush1.msra.mxu0 0.0
  %781 = vmatprep.subr.mxu0 0.0
  %782 = vmatpush1.msra.mxu0 0.0
  %783 = vmatprep.subr.mxu0 0.0
  %784 = vmatpush1.msra.mxu0 0.0
  %785 = vmatprep.subr.mxu0 0.0
  %786 = vmatpush1.msra.mxu0 0.0
  %787 = vmatprep.subr.mxu0 0.0
  %788 = vmatpush1.msra.mxu0 0.0
  %789 = vmatprep.subr.mxu0 0.0
  %790 = vmatpush1.msra.mxu0 0.0
  %791 = vmatprep.subr.mxu0 0.0
  %792 = vmatpush1.msra.mxu0 0.0
  %793 = vmatprep.subr.mxu0 0.0
  %794 = vmatpush1.msra.mxu0 0.0
  %795 = vmatprep.subr.mxu0 0.0
  %796 = vmatpush1.msra.mxu0 0.0
  %797 = vmatprep.subr.mxu0 0.0
  %798 = vmatpush1.msra.mxu0 0.0
  %799 = vmatprep.subr.mxu0 0.0
  %800 = vmatpush1.msra.mxu0 0.0
  %801 = vmatprep.subr.mxu0 0.0
  %802 = vmatpush1.msra.mxu0 0.0
  %803 = vmatprep.subr.mxu0 0.0
  %804 = vmatpush1.msra.mxu0 0.0
  %805 = vmatprep.subr.mxu0 0.0
  %806 = vmatpush1.msra.mxu0 0.0
  %807 = vmatprep.subr.mxu0 0.0
  %808 = vmatpush1.msra.mxu0 0.0
  %809 = vmatprep.subr.mxu0 0.0
  %810 = vmatpush1.msra.mxu0 0.0
  %811 = vmatprep.mubr.f32.mxu0 0.0
  %812 = vmatmul.mubr.f32.gmra.mrb[0].mxu0 %v674
  %v813 = vpop.f32.mrb[0].mxu0
  %v814 = vadd.f32 %v671, %v813
  %v815 = vpop.f32.mrb[0].mxu0
  %v816 = vadd.f32 %v671, %v815
  %817 = vdwg.mxu0
  %vm818 = vcmask 1041408
  %v819 = vsel %vm818, %v743, -inf
  %v820 = vsel %vm818, %v745, -inf
  %v821 = vmax.f32 %v819, %v820
  %822 = vmax.xlane.f32.xlu0 %v821
  %v823 = vpop.xlane.xlu0 %822
  %v824 = vsub.f32 %v743, %v823
  %v825 = vsub.f32 %v745, %v823
  %v826 = vmul.f32 %v824, 1.442695
  %v827 = vpow.pop %v826
  %v828 = vmul.f32 %v825, 1.442695
  %v829 = vpow.pop %v828
  %v830 = vsel %vm818, %v827, 0.0
  %v831 = vsel %vm818, %v829, 0.0
  %v832 = vadd.f32 %v830, %v831
  %833 = vadd.xlane.f32.xlu0 %v832
  %v834 = vpop.xlane.xlu0 %833
  %v835 = vld [vmem:[#allocation3] sm:$0xff]
  %v836 = vld [vmem:[#allocation3 + $0x8] sm:$0xff]
  %v837 = vld [vmem:[#allocation3 + $0x10] sm:$0xff]
  %v838 = vld [vmem:[#allocation3 + $0x18] sm:$0xff]
  %v839 = vld [vmem:[#allocation3 + $0x20] sm:$0xff]
  %v840 = vld [vmem:[#allocation3 + $0x28] sm:$0xff]
  %v841 = vld [vmem:[#allocation3 + $0x30] sm:$0xff]
  %v842 = vld [vmem:[#allocation3 + $0x38] sm:$0xff]
  %843 = vmatprep.subr.mxu0 %v836
  %844 = vmatpush1.xpose.msra.mxu0 %v835
  %845 = vmatprep.subr.mxu0 %v838
  %846 = vmatpush1.xpose.msra.mxu0 %v837
  %847 = vmatprep.subr.mxu0 %v840
  %848 = vmatpush1.xpose.msra.mxu0 %v839
  %849 = vmatprep.subr.mxu0 %v842
  %850 = vmatpush1.xpose.msra.mxu0 %v841
  %851 = vmatprep.subr.mxu0 0.0
  %852 = vmatpush1.xpose.msra.mxu0 0.0
  %853 = vmatprep.subr.mxu0 0.0
  %854 = vmatpush1.xpose.msra.mxu0 0.0
  %855 = vmatprep.subr.mxu0 0.0
  %856 = vmatpush1.xpose.msra.mxu0 0.0
  %857 = vmatprep.subr.mxu0 0.0
  %858 = vmatpush1.xpose.msra.mxu0 0.0
  %859 = vmatprep.subr.mxu0 0.0
  %860 = vmatpush1.xpose.msra.mxu0 0.0
  %861 = vmatprep.subr.mxu0 0.0
  %862 = vmatpush1.xpose.msra.mxu0 0.0
  %863 = vmatprep.subr.mxu0 0.0
  %864 = vmatpush1.xpose.msra.mxu0 0.0
  %865 = vmatprep.subr.mxu0 0.0
  %866 = vmatpush1.xpose.msra.mxu0 0.0
  %867 = vmatprep.subr.mxu0 0.0
  %868 = vmatpush1.xpose.msra.mxu0 0.0
  %869 = vmatprep.subr.mxu0 0.0
  %870 = vmatpush1.xpose.msra.mxu0 0.0
  %871 = vmatprep.subr.mxu0 0.0
  %872 = vmatpush1.xpose.msra.mxu0 0.0
  %873 = vmatprep.subr.mxu0 0.0
  %874 = vmatpush1.xpose.msra.mxu0 0.0
  %875 = vmatprep.subr.mxu0 0.0
  %876 = vmatpush1.xpose.msra.mxu0 0.0
  %877 = vmatprep.subr.mxu0 0.0
  %878 = vmatpush1.xpose.msra.mxu0 0.0
  %879 = vmatprep.subr.mxu0 0.0
  %880 = vmatpush1.xpose.msra.mxu0 0.0
  %881 = vmatprep.subr.mxu0 0.0
  %882 = vmatpush1.xpose.msra.mxu0 0.0
  %883 = vmatprep.subr.mxu0 0.0
  %884 = vmatpush1.xpose.msra.mxu0 0.0
  %885 = vmatprep.subr.mxu0 0.0
  %886 = vmatpush1.xpose.msra.mxu0 0.0
  %887 = vmatprep.subr.mxu0 0.0
  %888 = vmatpush1.xpose.msra.mxu0 0.0
  %889 = vmatprep.subr.mxu0 0.0
  %890 = vmatpush1.xpose.msra.mxu0 0.0
  %891 = vmatprep.subr.mxu0 0.0
  %892 = vmatpush1.xpose.msra.mxu0 0.0
  %893 = vmatprep.subr.mxu0 0.0
  %894 = vmatpush1.xpose.msra.mxu0 0.0
  %895 = vmatprep.subr.mxu0 0.0
  %896 = vmatpush1.xpose.msra.mxu0 0.0
  %897 = vmatprep.subr.mxu0 0.0
  %898 = vmatpush1.xpose.msra.mxu0 0.0
  %899 = vmatprep.subr.mxu0 0.0
  %900 = vmatpush1.xpose.msra.mxu0 0.0
  %901 = vmatprep.subr.mxu0 0.0
  %902 = vmatpush1.xpose.msra.mxu0 0.0
  %903 = vmatprep.subr.mxu0 0.0
  %904 = vmatpush1.xpose.msra.mxu0 0.0
  %905 = vmatprep.subr.mxu0 0.0
  %906 = vmatpush1.xpose.msra.mxu0 0.0
  %907 = vmatprep.mubr.f32.mxu0 %v829
  %908 = vmatmul.mubr.f32.gmra.mrb[0].mxu0 %v827
  %v909 = vpop.f32.mrb[0].mxu0
  %v910 = vadd.f32 0.0, %v909
  %v911 = vpop.f32.mrb[0].mxu0
  %912 = vdwg.mxu0
  %v913 = vrcp.pop %v834
  %v914 = vmul.f32 %v834, %v913
  %v915 = vsub.f32 2.0, %v914
  %v916 = vmul.f32 %v913, %v915
  %v917 = vmul.f32 %v910, %v916
  %vm918 = vcmask 254976
  %919 = vst.msk [vmem:[%s8] sm:$0x3] %vm918, %v917
  %v920 = vsel %vm818, %v814, -inf
  %v921 = vsel %vm818, %v816, -inf
  %v922 = vmax.f32 %v920, %v921
  %923 = vmax.xlane.f32.xlu0 %v922
  %v924 = vpop.xlane.xlu0 %923
  %v925 = vsub.f32 %v814, %v924
  %v926 = vsub.f32 %v816, %v924
  %v927 = vmul.f32 %v925, 1.442695
  %v928 = vpow.pop %v927
  %v929 = vmul.f32 %v926, 1.442695
  %v930 = vpow.pop %v929
  %v931 = vsel %vm818, %v928, 0.0
  %v932 = vsel %vm818, %v930, 0.0
  %v933 = vadd.f32 %v931, %v932
  %934 = vadd.xlane.f32.xlu0 %v933
  %v935 = vpop.xlane.xlu0 %934
  %v936 = vld [vmem:[%s595] sm:$0xff]
  %v937 = vld [vmem:[%s595 + $0x8] sm:$0xff]
  %v938 = vld [vmem:[%s595 + $0x10] sm:$0xff]
  %v939 = vld [vmem:[%s595 + $0x18] sm:$0xff]
  %v940 = vld [vmem:[%s595 + $0x20] sm:$0xff]
  %v941 = vld [vmem:[%s595 + $0x28] sm:$0xff]
  %v942 = vld [vmem:[%s595 + $0x30] sm:$0xff]
  %v943 = vld [vmem:[%s595 + $0x38] sm:$0xff]
  %944 = vmatprep.subr.mxu0 %v937
  %945 = vmatpush1.xpose.msra.mxu0 %v936
  %946 = vmatprep.subr.mxu0 %v939
  %947 = vmatpush1.xpose.msra.mxu0 %v938
  %948 = vmatprep.subr.mxu0 %v941
  %949 = vmatpush1.xpose.msra.mxu0 %v940
  %950 = vmatprep.subr.mxu0 %v943
  %951 = vmatpush1.xpose.msra.mxu0 %v942
  %952 = vmatprep.subr.mxu0 0.0
  %953 = vmatpush1.xpose.msra.mxu0 0.0
  %954 = vmatprep.subr.mxu0 0.0
  %955 = vmatpush1.xpose.msra.mxu0 0.0
  %956 = vmatprep.subr.mxu0 0.0
  %957 = vmatpush1.xpose.msra.mxu0 0.0
  %958 = vmatprep.subr.mxu0 0.0
  %959 = vmatpush1.xpose.msra.mxu0 0.0
  %960 = vmatprep.subr.mxu0 0.0
  %961 = vmatpush1.xpose.msra.mxu0 0.0
  %962 = vmatprep.subr.mxu0 0.0
  %963 = vmatpush1.xpose.msra.mxu0 0.0
  %964 = vmatprep.subr.mxu0 0.0
  %965 = vmatpush1.xpose.msra.mxu0 0.0
  %966 = vmatprep.subr.mxu0 0.0
  %967 = vmatpush1.xpose.msra.mxu0 0.0
  %968 = vmatprep.subr.mxu0 0.0
  %969 = vmatpush1.xpose.msra.mxu0 0.0
  %970 = vmatprep.subr.mxu0 0.0
  %971 = vmatpush1.xpose.msra.mxu0 0.0
  %972 = vmatprep.subr.mxu0 0.0
  %973 = vmatpush1.xpose.msra.mxu0 0.0
  %974 = vmatprep.subr.mxu0 0.0
  %975 = vmatpush1.xpose.msra.mxu0 0.0
  %976 = vmatprep.subr.mxu0 0.0
  %977 = vmatpush1.xpose.msra.mxu0 0.0
  %978 = vmatprep.subr.mxu0 0.0
  %979 = vmatpush1.xpose.msra.mxu0 0.0
  %980 = vmatprep.subr.mxu0 0.0
  %981 = vmatpush1.xpose.msra.mxu0 0.0
  %982 = vmatprep.subr.mxu0 0.0
  %983 = vmatpush1.xpose.msra.mxu0 0.0
  %984 = vmatprep.subr.mxu0 0.0
  %985 = vmatpush1.xpose.msra.mxu0 0.0
  %986 = vmatprep.subr.mxu0 0.0
  %987 = vmatpush1.xpose.msra.mxu0 0.0
  %988 = vmatprep.subr.mxu0 0.0
  %989 = vmatpush1.xpose.msra.mxu0 0.0
  %990 = vmatprep.subr.mxu0 0.0
  %991 = vmatpush1.xpose.msra.mxu0 0.0
  %992 = vmatprep.subr.mxu0 0.0
  %993 = vmatpush1.xpose.msra.mxu0 0.0
  %994 = vmatprep.subr.mxu0 0.0
  %995 = vmatpush1.xpose.msra.mxu0 0.0
  %996 = vmatprep.subr.mxu0 0.0
  %997 = vmatpush1.xpose.msra.mxu0 0.0
  %998 = vmatprep.subr.mxu0 0.0
  %999 = vmatpush1.xpose.msra.mxu0 0.0
  %1000 = vmatprep.subr.mxu0 0.0
  %1001 = vmatpush1.xpose.msra.mxu0 0.0
  %1002 = vmatprep.subr.mxu0 0.0
  %1003 = vmatpush1.xpose.msra.mxu0 0.0
  %1004 = vmatprep.subr.mxu0 0.0
  %1005 = vmatpush1.xpose.msra.mxu0 0.0
  %1006 = vmatprep.subr.mxu0 0.0
  %1007 = vmatpush1.xpose.msra.mxu0 0.0
  %1008 = vmatprep.mubr.f32.mxu0 %v930
  %1009 = vmatmul.mubr.f32.gmra.mrb[0].mxu0 %v928
  %v1010 = vpop.f32.mrb[0].mxu0
  %v1011 = vadd.f32 0.0, %v1010
  %v1012 = vpop.f32.mrb[0].mxu0
  %1013 = vdwg.mxu0
  %v1014 = vrcp.pop %v935
  %v1015 = vmul.f32 %v935, %v1014
  %v1016 = vsub.f32 2.0, %v1015
  %v1017 = vmul.f32 %v1014, %v1016
  %v1018 = vmul.f32 %v1011, %v1017
  %s1019 = scalar_lea.vmem %s8, 2
  %1020 = vst.msk [vmem:[%s1019] sm:$0x3] %vm918, %v1018
  // Predicated region
  $region34: #{attention_forward.1} parent=0 // pred_check
    _
  $region35: #{attention_forward.1} parent=0 // pred_check_branch
    %1022 = sbr.rel (0) target = $region37
  $region36: #{attention_forward.1} parent=0 // pred_region
    _
  $region37: #{attention_forward.1} parent=0 // pred_fallthru
    _
  // Predicated region
  $region38: #{attention_forward.1} parent=0 // pred_check
    _
  $region39: #{attention_forward.1} parent=0 // pred_check_branch
    %1024 = sbr.rel (0) target = $region41
  $region40: #{attention_forward.1} parent=0 // pred_region
    _
  $region41: #{attention_forward.1} parent=0 // pred_fallthru
    _

</llo_original>
